<compile_context>
chip_gen: v7x
topology: tpu7x:2x2x1
jax: 0.10.0
libtpu: 0.0.40
codegen_flags: <defaults>
</compile_context>

<pallas_src>
import functools
import math

import jax
import jax.numpy as jnp
from jax.experimental import pallas as pl
from jax.experimental.pallas import tpu as pltpu


# ----------------------------------------------------------------------------
# Fused per-graph kernel body: adjacency fusion + mean-threshold + gc1(+ReLU)
# + gc2 + log_softmax(dim=1) + Linear head on the transpose.
# One grid step == one graph.
# ----------------------------------------------------------------------------
def _gcn_fused_kernel(adj3_ref,        # (E, N, N)  VMEM (edge-major; N on lanes)
                      x_ref,           # (N, Fin)   VMEM
                      gc1_w_ref,       # (Fin, H)   VMEM
                      gc1_b_ref,       # (1, H)     VMEM
                      gc2_w_ref,       # (H, C)     VMEM
                      gc2_b_ref,       # (1, C)     VMEM
                      lin_w_ref,       # (N, 1)     VMEM (head weight column)
                      fusion_w_ref,    # (E,)       SMEM
                      fusion_b_ref,    # (1,)       SMEM
                      lin_b_ref,       # (1,)       SMEM
                      out_ref,         # (1, C)     VMEM
                      *, num_edges, inv_nn):
    # --- adjacency fusion: unrolled VPU FMA chain over the edge dim ----------
    fused = adj3_ref[0] * fusion_w_ref[0]
    for e in range(1, num_edges):
        fused = fused + adj3_ref[e] * fusion_w_ref[e]
    fused = fused + fusion_b_ref[0]                            # (N, N) f32

    # --- 'mean' threshold: lane reduce -> sublane reduce -> * 1/(N*N) --------
    # (N*N is a power of two here, so *inv_nn is bit-identical to jnp.mean.)
    thr = jnp.sum(jnp.sum(fused, axis=1, keepdims=True)) * inv_nn
    adj = jnp.where(fused > thr, 1.0, 0.0)                     # (N, N) f32 0/1
    # TODO(synk): 'median' threshold path (torch.median) needs an in-kernel
    # sort/select; only the 'mean' path is implemented.

    # MXU operands in bf16 (adj is exactly 0/1 -> bf16-exact); f32 accumulate.
    adj_bf = adj.astype(jnp.bfloat16)

    # --- gc1: relu(adj @ (x @ W1) + b1) --------------------------------------
    s1 = jnp.dot(x_ref[...].astype(jnp.bfloat16),
                 gc1_w_ref[...].astype(jnp.bfloat16),
                 preferred_element_type=jnp.float32)           # (N, H)
    h = jnp.dot(adj_bf, s1.astype(jnp.bfloat16),
                preferred_element_type=jnp.float32) + gc1_b_ref[...]
    h = jnp.maximum(h, 0.0)
    # dropout: identity at inference

    # --- gc2: adj @ (h @ W2) + b2 --------------------------------------------
    s2 = jnp.dot(h.astype(jnp.bfloat16),
                 gc2_w_ref[...].astype(jnp.bfloat16),
                 preferred_element_type=jnp.float32)           # (N, C)
    g = jnp.dot(adj_bf, s2.astype(jnp.bfloat16),
                preferred_element_type=jnp.float32) + gc2_b_ref[...]

    # --- log_softmax over dim=1 (f32, exp/log on the EUP) --------------------
    m = jnp.max(g, axis=1, keepdims=True)
    z = g - m
    lse = jnp.log(jnp.sum(jnp.exp(z), axis=1, keepdims=True))
    ls = z - lse                                               # (N, C)

    # --- Linear head on the transpose: out[0,c] = sum_n w[n] * ls[n,c] + b ---
    # VPU broadcast-multiply + sublane reduce (C stays on lanes, no MXU).
    out = jnp.sum(lin_w_ref[...] * ls, axis=0, keepdims=True) + lin_b_ref[0]
    out_ref[...] = out.astype(out_ref.dtype)                   # (1, C)
    # TODO(synk): for large batches with tiny C, stack G graphs' (1,C) rows
    # into a lane-dense (1, G*C) output block to avoid masked vst.msk stores.


def _make_cost_estimate(batch, n, nfeat, nhid, nclass, num_edges):
    per_graph_flops = (
        2 * num_edges * n * n                                   # fusion FMA chain
        + 3 * n * n                                             # mean + threshold
        + 2 * n * nfeat * nhid + 2 * n * n * nhid + 2 * n * nhid   # gc1
        + 2 * n * nhid * nclass + 2 * n * n * nclass + n * nclass  # gc2
        + 4 * n * nclass                                        # log_softmax
        + 2 * n * nclass)                                       # head
    per_graph_transcendentals = n * nclass + n                  # exp + log
    bytes_accessed = 4 * (batch * (num_edges * n * n + n * nfeat + nclass)
                          + nfeat * nhid + nhid
                          + nhid * nclass + nclass
                          + n + num_edges + 2)
    return pl.CostEstimate(flops=batch * per_graph_flops,
                           transcendentals=batch * per_graph_transcendentals,
                           bytes_accessed=bytes_accessed)


# ----------------------------------------------------------------------------
# Batched forward. adj3_em must be the (graph-static) edge-major layout
# (B, E, N, N) produced once by prepare_adj3 — no per-call transpose here.
# ----------------------------------------------------------------------------
@jax.jit
def gcn_forward(params, x, adj3_em):
    batch, n, nfeat = x.shape
    num_edges = adj3_em.shape[1]
    nhid = params["gc1_w"].shape[1]
    nclass = params["gc2_w"].shape[1]

    kernel = functools.partial(_gcn_fused_kernel,
                               num_edges=num_edges,
                               inv_nn=1.0 / float(n * n))

    # One graph per grid step (squeezed leading batch dim).
    def batched(shape_tail):
        return pl.BlockSpec((None,) + shape_tail,
                            lambda b: (b,) + (0,) * len(shape_tail))

    # Shared weights: constant index_map -> block stays resident, no re-DMA.
    def resident(shape):
        return pl.BlockSpec(shape, lambda b: (0,) * len(shape))

    def smem(shape):
        return pl.BlockSpec(shape, lambda b: (0,) * len(shape),
                            memory_space=pltpu.MemorySpace.SMEM)

    return pl.pallas_call(
        kernel,
        out_shape=jax.ShapeDtypeStruct((batch, 1, nclass), jnp.float32),
        grid=(batch,),
        in_specs=[
            batched((num_edges, n, n)),       # adj3_em  (per-graph block)
            batched((n, nfeat)),              # x        (per-graph block)
            resident((nfeat, nhid)),          # gc1_w
            resident((1, nhid)),              # gc1_b
            resident((nhid, nclass)),         # gc2_w
            resident((1, nclass)),            # gc2_b
            resident((n, 1)),                 # lin_w (column)
            smem((num_edges,)),               # fusion_w
            smem((1,)),                       # fusion_b
            smem((1,)),                       # lin_b
        ],
        out_specs=batched((1, nclass)),
        compiler_params=pltpu.CompilerParams(
            dimension_semantics=("parallel",)),   # shards graphs across v7x TCs
        cost_estimate=_make_cost_estimate(batch, n, nfeat, nhid, nclass,
                                          num_edges),
    )(adj3_em, x,
      params["gc1_w"], params["gc1_b"],
      params["gc2_w"], params["gc2_b"],
      params["lin_w"],
      params["fusion_w"], params["fusion_b"], params["lin_b"])
    # TODO(synk): when N scales up, switch to a node-row tiled grid; whole-graph
    # VMEM residency costs ~4*(E+2)*N^2 B (adj3 + fused + adj) plus activations,
    # which hits v7x's 64 MiB physical / 32 MiB scoped VMEM around N~1.1-1.6k
    # (vs ~2.3k on v5e/v6e's 128 MiB). Near the scoped default (16 MiB v5e /
    # 32 MiB v6e/v7x), set pltpu.CompilerParams(vmem_limit_bytes=...).


def prepare_adj3(adj3_nat):
    """One-time, graph-static prep: (B, N, N, E) -> edge-major (B, E, N, N).

    Keeps N on the 128-lane axis inside the kernel and removes the per-call
    XLA transpose from the jitted forward path.
    """
    return jnp.transpose(adj3_nat, (0, 3, 1, 2))


# ----------------------------------------------------------------------------
# Parameter construction (matches the PyTorch reset_parameters / nn.Linear
# init distributions; head weight stored directly as an (N, 1) column).
# ----------------------------------------------------------------------------
def init_params(key, nfeat, nhid, nclass, num_edges):
    ks = jax.random.split(key, 8)

    def unif(k, shape, stdv):
        return jax.random.uniform(k, shape, jnp.float32, -stdv, stdv)

    # fusion_layer: nn.Linear(num_edges, 1)  (flattened 1D for SMEM)
    s = 1.0 / math.sqrt(num_edges)
    fusion_w = unif(ks[0], (num_edges,), s)
    fusion_b = unif(ks[1], (1,), s)

    # gc1: GraphConvolution(nfeat, nhid), stdv = 1/sqrt(out_features)
    s = 1.0 / math.sqrt(nhid)
    gc1_w = unif(ks[2], (nfeat, nhid), s)
    gc1_b = unif(ks[3], (1, nhid), s)

    # gc2: GraphConvolution(nhid, nclass)
    s = 1.0 / math.sqrt(nclass)
    gc2_w = unif(ks[4], (nhid, nclass), s)
    gc2_b = unif(ks[5], (1, nclass), s)

    # LinearLayer: nn.Linear(nfeat, 1)  (requires N == nfeat); stored as column.
    s = 1.0 / math.sqrt(nfeat)
    lin_w = unif(ks[6], (nfeat, 1), s)
    lin_b = unif(ks[7], (1,), s)

    return dict(fusion_w=fusion_w, fusion_b=fusion_b,
                gc1_w=gc1_w, gc1_b=gc1_b,
                gc2_w=gc2_w, gc2_b=gc2_b,
                lin_w=lin_w, lin_b=lin_b)


# ----------------------------------------------------------------------------
# Pure-JAX mirror of the PyTorch forward (batched). With match_kernel_bf16=True
# it applies the same bf16 MXU-operand rounding as the kernel so the check can
# stay tight; the bf16 rounding is the only (intended) deviation from the pure
# f32 PyTorch math.
# ----------------------------------------------------------------------------
def _reference_forward(params, x, adj3_em, match_kernel_bf16=True):
    num_edges = adj3_em.shape[1]
    n = x.shape[1]
    cast = (lambda a: a.astype(jnp.bfloat16)) if match_kernel_bf16 else (lambda a: a)

    def one_graph(xg, ag):
        fused = ag[0] * params["fusion_w"][0]
        for e in range(1, num_edges):
            fused = fused + ag[e] * params["fusion_w"][e]
        fused = fused + params["fusion_b"][0]
        thr = jnp.sum(fused) * (1.0 / float(n * n))      # == mean (N*N pow2)
        adj = jnp.where(fused > thr, 1.0, 0.0)

        s1 = jnp.dot(cast(xg), cast(params["gc1_w"]),
                     preferred_element_type=jnp.float32)
        h = jnp.dot(cast(adj), cast(s1),
                    preferred_element_type=jnp.float32) + params["gc1_b"]
        h = jnp.maximum(h, 0.0)
        s2 = jnp.dot(cast(h), cast(params["gc2_w"]),
                     preferred_element_type=jnp.float32)
        g = jnp.dot(cast(adj), cast(s2),
                    preferred_element_type=jnp.float32) + params["gc2_b"]

        ls = jax.nn.log_softmax(g, axis=1)
        out = jnp.sum(params["lin_w"] * ls, axis=0, keepdims=True) \
            + params["lin_b"][0]
        return out                                        # (1, C)

    return jax.vmap(one_graph)(x, adj3_em)                # (B, 1, C)


if __name__ == "__main__":
    BATCH = 8         # graphs per pallas_call (grid axis, "parallel" for v7x)
    N = 16            # nodes per graph == nfeat (required by LinearLayer(nfeat, 1))
    NFEAT = 16
    NHID = 32
    NCLASS = 8
    NUM_EDGES = 4

    key = jax.random.PRNGKey(0)
    k_x, k_adj, k_p = jax.random.split(key, 3)

    x = jax.random.normal(k_x, (BATCH, N, NFEAT), jnp.float32)
    adj3 = jax.random.uniform(k_adj, (BATCH, N, N, NUM_EDGES), jnp.float32)
    params = init_params(k_p, NFEAT, NHID, NCLASS, NUM_EDGES)

    # Graph-static prep, done ONCE outside the jitted forward (no per-call
    # transpose feeding the kernel).
    adj3_em = jax.block_until_ready(prepare_adj3(adj3))

    out = gcn_forward(params, x, adj3_em)
    out = jax.block_until_ready(out)

    ref = _reference_forward(params, x, adj3_em, match_kernel_bf16=True)
    assert out.shape == (BATCH, 1, NCLASS), out.shape
    assert jnp.allclose(out, ref, atol=1e-4, rtol=1e-4), (out, ref)

    print("KERNEL_OK")
</pallas_src>

<mosaic_0001>
module attributes {stable_mosaic.version = 11 : i64} {
  func.func @_gcn_fused_kernel(%arg0: i32, %arg1: memref<1x4x16x16xf32, #tpu.memory_space<vmem>>, %arg2: memref<1x16x16xf32, #tpu.memory_space<vmem>>, %arg3: memref<16x32xf32, #tpu.memory_space<vmem>>, %arg4: memref<1x32xf32, #tpu.memory_space<vmem>>, %arg5: memref<32x8xf32, #tpu.memory_space<vmem>>, %arg6: memref<1x8xf32, #tpu.memory_space<vmem>>, %arg7: memref<16x1xf32, #tpu.memory_space<vmem>>, %arg8: memref<4xf32, #tpu.memory_space<smem>>, %arg9: memref<1xf32, #tpu.memory_space<smem>>, %arg10: memref<1xf32, #tpu.memory_space<smem>>, %arg11: memref<1x1x8xf32, #tpu.memory_space<vmem>>) attributes {dimension_semantics = [#tpu.dimension_semantics<parallel>], iteration_bounds = array<i64: 8>, scalar_prefetch = 0 : i64, scratch_operands = 0 : i64, tpu.core_type = #tpu.core_type<tc>, window_params = [{transform_indices = @transform_0, window_bounds = array<i64: 1, 4, 16, 16>}, {transform_indices = @transform_1, window_bounds = array<i64: 1, 16, 16>}, {pipeline_mode = #tpu.pipeline_mode<synchronous>, transform_indices = @transform_2, window_bounds = array<i64: 16, 32>}, {pipeline_mode = #tpu.pipeline_mode<synchronous>, transform_indices = @transform_3, window_bounds = array<i64: 1, 32>}, {pipeline_mode = #tpu.pipeline_mode<synchronous>, transform_indices = @transform_4, window_bounds = array<i64: 32, 8>}, {pipeline_mode = #tpu.pipeline_mode<synchronous>, transform_indices = @transform_5, window_bounds = array<i64: 1, 8>}, {pipeline_mode = #tpu.pipeline_mode<synchronous>, transform_indices = @transform_6, window_bounds = array<i64: 16, 1>}, {transform_indices = @transform_7, window_bounds = array<i64: 4>}, {transform_indices = @transform_8, window_bounds = array<i64: 1>}, {transform_indices = @transform_9, window_bounds = array<i64: 1>}, {transform_indices = @transform_10, window_bounds = array<i64: 1, 1, 8>}]} {
    %c0 = arith.constant 0 : index
    %c0_0 = arith.constant 0 : index
    %c0_1 = arith.constant 0 : index
    %c0_2 = arith.constant 0 : index
    %0 = vector.load %arg1[%c0, %c0_0, %c0_1, %c0_2] : memref<1x4x16x16xf32, #tpu.memory_space<vmem>>, vector<1x1x16x16xf32>
    %1 = vector.shape_cast %0 : vector<1x1x16x16xf32> to vector<16x16xf32>
    %c0_3 = arith.constant 0 : index
    %2 = memref.load %arg8[%c0_3] : memref<4xf32, #tpu.memory_space<smem>>
    %3 = vector.broadcast %2 : f32 to vector<16x16xf32>
    %4 = arith.mulf %1, %3 : vector<16x16xf32>
    %c0_4 = arith.constant 0 : index
    %c1 = arith.constant 1 : index
    %c0_5 = arith.constant 0 : index
    %c0_6 = arith.constant 0 : index
    %5 = vector.load %arg1[%c0_4, %c1, %c0_5, %c0_6] : memref<1x4x16x16xf32, #tpu.memory_space<vmem>>, vector<1x1x16x16xf32>
    %6 = vector.shape_cast %5 : vector<1x1x16x16xf32> to vector<16x16xf32>
    %c1_7 = arith.constant 1 : index
    %7 = memref.load %arg8[%c1_7] : memref<4xf32, #tpu.memory_space<smem>>
    %8 = vector.broadcast %7 : f32 to vector<16x16xf32>
    %9 = arith.mulf %6, %8 : vector<16x16xf32>
    %10 = arith.addf %4, %9 : vector<16x16xf32>
    %c0_8 = arith.constant 0 : index
    %c2 = arith.constant 2 : index
    %c0_9 = arith.constant 0 : index
    %c0_10 = arith.constant 0 : index
    %11 = vector.load %arg1[%c0_8, %c2, %c0_9, %c0_10] : memref<1x4x16x16xf32, #tpu.memory_space<vmem>>, vector<1x1x16x16xf32>
    %12 = vector.shape_cast %11 : vector<1x1x16x16xf32> to vector<16x16xf32>
    %c2_11 = arith.constant 2 : index
    %13 = memref.load %arg8[%c2_11] : memref<4xf32, #tpu.memory_space<smem>>
    %14 = vector.broadcast %13 : f32 to vector<16x16xf32>
    %15 = arith.mulf %12, %14 : vector<16x16xf32>
    %16 = arith.addf %10, %15 : vector<16x16xf32>
    %c0_12 = arith.constant 0 : index
    %c3 = arith.constant 3 : index
    %c0_13 = arith.constant 0 : index
    %c0_14 = arith.constant 0 : index
    %17 = vector.load %arg1[%c0_12, %c3, %c0_13, %c0_14] : memref<1x4x16x16xf32, #tpu.memory_space<vmem>>, vector<1x1x16x16xf32>
    %18 = vector.shape_cast %17 : vector<1x1x16x16xf32> to vector<16x16xf32>
    %c3_15 = arith.constant 3 : index
    %19 = memref.load %arg8[%c3_15] : memref<4xf32, #tpu.memory_space<smem>>
    %20 = vector.broadcast %19 : f32 to vector<16x16xf32>
    %21 = arith.mulf %18, %20 : vector<16x16xf32>
    %22 = arith.addf %16, %21 : vector<16x16xf32>
    %c0_16 = arith.constant 0 : index
    %23 = memref.load %arg9[%c0_16] : memref<1xf32, #tpu.memory_space<smem>>
    %24 = vector.broadcast %23 : f32 to vector<16x16xf32>
    %25 = arith.addf %22, %24 : vector<16x16xf32>
    %cst = arith.constant dense<0.000000e+00> : vector<16xf32>
    %26 = vector.multi_reduction <add>, %25, %cst [1] : vector<16x16xf32> to vector<16xf32>
    %27 = vector.shape_cast %26 : vector<16xf32> to vector<16x1xf32>
    %28 = vector.shape_cast %27 : vector<16x1xf32> to vector<1x16x1xf32>
    %cst_17 = arith.constant dense<0.000000e+00> : vector<1xf32>
    %29 = vector.multi_reduction <add>, %28, %cst_17 [1, 2] : vector<1x16x1xf32> to vector<1xf32>
    %30 = vector.shape_cast %29 : vector<1xf32> to vector<1x1x1xf32>
    %31 = vector.extract %30[0, 0, 0] : f32 from vector<1x1x1xf32>
    %cst_18 = arith.constant 3.906250e-03 : f32
    %32 = arith.mulf %31, %cst_18 : f32
    %33 = vector.broadcast %32 : f32 to vector<16x16xf32>
    %34 = arith.cmpf ogt, %25, %33 : vector<16x16xf32>
    %cst_19 = arith.constant 1.000000e+00 : f32
    %cst_20 = arith.constant 0.000000e+00 : f32
    %35 = vector.broadcast %cst_19 : f32 to vector<16x16xf32>
    %36 = vector.broadcast %cst_20 : f32 to vector<16x16xf32>
    %37 = arith.select %34, %35, %36 : vector<16x16xi1>, vector<16x16xf32>
    %38 = arith.truncf %37 : vector<16x16xf32> to vector<16x16xbf16>
    %c0_21 = arith.constant 0 : index
    %c0_22 = arith.constant 0 : index
    %c0_23 = arith.constant 0 : index
    %39 = vector.load %arg2[%c0_21, %c0_22, %c0_23] : memref<1x16x16xf32, #tpu.memory_space<vmem>>, vector<1x16x16xf32>
    %40 = vector.shape_cast %39 : vector<1x16x16xf32> to vector<16x16xf32>
    %41 = arith.truncf %40 : vector<16x16xf32> to vector<16x16xbf16>
    %c0_24 = arith.constant 0 : index
    %c0_25 = arith.constant 0 : index
    %42 = vector.load %arg3[%c0_24, %c0_25] : memref<16x32xf32, #tpu.memory_space<vmem>>, vector<16x32xf32>
    %43 = arith.truncf %42 : vector<16x32xf32> to vector<16x32xbf16>
    %cst_26 = arith.constant dense<0.000000e+00> : vector<16x32xf32>
    %44 = tpu.matmul %41, %43, %cst_26 {dimension_numbers = #tpu.dot_dimension_numbers<[1], [0], [0], [1], [0, 0, 1, 1], [], []>} : vector<16x16xbf16>, vector<16x32xbf16>, vector<16x32xf32> -> vector<16x32xf32>
    %45 = arith.truncf %44 : vector<16x32xf32> to vector<16x32xbf16>
    %cst_27 = arith.constant dense<0.000000e+00> : vector<16x32xf32>
    %46 = tpu.matmul %38, %45, %cst_27 {dimension_numbers = #tpu.dot_dimension_numbers<[1], [0], [0], [1], [0, 0, 1, 1], [], []>} : vector<16x16xbf16>, vector<16x32xbf16>, vector<16x32xf32> -> vector<16x32xf32>
    %c0_28 = arith.constant 0 : index
    %c0_29 = arith.constant 0 : index
    %47 = vector.load %arg4[%c0_28, %c0_29] : memref<1x32xf32, #tpu.memory_space<vmem>>, vector<1x32xf32>
    %48 = vector.broadcast %47 : vector<1x32xf32> to vector<16x32xf32>
    %49 = arith.addf %46, %48 : vector<16x32xf32>
    %cst_30 = arith.constant 0.000000e+00 : f32
    %50 = vector.broadcast %cst_30 : f32 to vector<16x32xf32>
    %51 = arith.maximumf %49, %50 : vector<16x32xf32>
    %52 = arith.truncf %51 : vector<16x32xf32> to vector<16x32xbf16>
    %c0_31 = arith.constant 0 : index
    %c0_32 = arith.constant 0 : index
    %53 = vector.load %arg5[%c0_31, %c0_32] : memref<32x8xf32, #tpu.memory_space<vmem>>, vector<32x8xf32>
    %54 = arith.truncf %53 : vector<32x8xf32> to vector<32x8xbf16>
    %cst_33 = arith.constant dense<0.000000e+00> : vector<16x8xf32>
    %55 = tpu.matmul %52, %54, %cst_33 {dimension_numbers = #tpu.dot_dimension_numbers<[1], [0], [0], [1], [0, 0, 1, 1], [], []>} : vector<16x32xbf16>, vector<32x8xbf16>, vector<16x8xf32> -> vector<16x8xf32>
    %56 = arith.truncf %55 : vector<16x8xf32> to vector<16x8xbf16>
    %cst_34 = arith.constant dense<0.000000e+00> : vector<16x8xf32>
    %57 = tpu.matmul %38, %56, %cst_34 {dimension_numbers = #tpu.dot_dimension_numbers<[1], [0], [0], [1], [0, 0, 1, 1], [], []>} : vector<16x16xbf16>, vector<16x8xbf16>, vector<16x8xf32> -> vector<16x8xf32>
    %c0_35 = arith.constant 0 : index
    %c0_36 = arith.constant 0 : index
    %58 = vector.load %arg6[%c0_35, %c0_36] : memref<1x8xf32, #tpu.memory_space<vmem>>, vector<1x8xf32>
    %59 = vector.broadcast %58 : vector<1x8xf32> to vector<16x8xf32>
    %60 = arith.addf %57, %59 : vector<16x8xf32>
    %cst_37 = arith.constant dense<0xFF800000> : vector<16xf32>
    %61 = vector.multi_reduction <maximumf>, %60, %cst_37 [1] : vector<16x8xf32> to vector<16xf32>
    %62 = vector.shape_cast %61 : vector<16xf32> to vector<16x1xf32>
    %63 = vector.broadcast %62 : vector<16x1xf32> to vector<16x8xf32>
    %64 = arith.subf %60, %63 : vector<16x8xf32>
    %65 = math.exp %64 : vector<16x8xf32>
    %cst_38 = arith.constant dense<0.000000e+00> : vector<16xf32>
    %66 = vector.multi_reduction <add>, %65, %cst_38 [1] : vector<16x8xf32> to vector<16xf32>
    %67 = vector.shape_cast %66 : vector<16xf32> to vector<16x1xf32>
    %68 = math.log %67 : vector<16x1xf32>
    %69 = vector.broadcast %68 : vector<16x1xf32> to vector<16x8xf32>
    %70 = arith.subf %64, %69 : vector<16x8xf32>
    %c0_39 = arith.constant 0 : index
    %c0_40 = arith.constant 0 : index
    %71 = vector.load %arg7[%c0_39, %c0_40] : memref<16x1xf32, #tpu.memory_space<vmem>>, vector<16x1xf32>
    %72 = vector.broadcast %71 : vector<16x1xf32> to vector<16x8xf32>
    %73 = arith.mulf %72, %70 : vector<16x8xf32>
    %cst_41 = arith.constant dense<0.000000e+00> : vector<8xf32>
    %74 = vector.multi_reduction <add>, %73, %cst_41 [0] : vector<16x8xf32> to vector<8xf32>
    %75 = vector.shape_cast %74 : vector<8xf32> to vector<1x8xf32>
    %c0_42 = arith.constant 0 : index
    %76 = memref.load %arg10[%c0_42] : memref<1xf32, #tpu.memory_space<smem>>
    %77 = vector.broadcast %76 : f32 to vector<1x8xf32>
    %78 = arith.addf %75, %77 : vector<1x8xf32>
    %c0_43 = arith.constant 0 : index
    %c0_44 = arith.constant 0 : index
    %c0_45 = arith.constant 0 : index
    %79 = vector.load %arg11[%c0_43, %c0_44, %c0_45] : memref<1x1x8xf32, #tpu.memory_space<vmem>>, vector<1x1x8xf32>
    %80 = vector.shape_cast %79 : vector<1x1x8xf32> to vector<1x8xf32>
    %81 = vector.shape_cast %78 : vector<1x8xf32> to vector<1x1x8xf32>
    tpu.vector_store %arg11[%c0_43, %c0_44, %c0_45], %81 {strides = array<i32>} : memref<1x1x8xf32, #tpu.memory_space<vmem>>, vector<1x1x8xf32>,
    return
  }
  func.func @transform_0(%arg0: i32) -> (i32, i32, i32, i32) {
    %c0_i32 = arith.constant 0 : i32
    %c0_i32_0 = arith.constant 0 : i32
    %c0_i32_1 = arith.constant 0 : i32
    %c0_i32_2 = arith.constant 0 : i32
    return %arg0, %c0_i32, %c0_i32_0, %c0_i32_1 : i32, i32, i32, i32
  }
  func.func @transform_1(%arg0: i32) -> (i32, i32, i32) {
    %c0_i32 = arith.constant 0 : i32
    %c0_i32_0 = arith.constant 0 : i32
    %c0_i32_1 = arith.constant 0 : i32
    return %arg0, %c0_i32, %c0_i32_0 : i32, i32, i32
  }
  func.func @transform_2(%arg0: i32) -> (i32, i32) {
    %c0_i32 = arith.constant 0 : i32
    %c0_i32_0 = arith.constant 0 : i32
    %c0_i32_1 = arith.constant 0 : i32
    return %c0_i32, %c0_i32_0 : i32, i32
  }
  func.func @transform_3(%arg0: i32) -> (i32, i32) {
    %c0_i32 = arith.constant 0 : i32
    %c0_i32_0 = arith.constant 0 : i32
    %c0_i32_1 = arith.constant 0 : i32
    return %c0_i32, %c0_i32_0 : i32, i32
  }
  func.func @transform_4(%arg0: i32) -> (i32, i32) {
    %c0_i32 = arith.constant 0 : i32
    %c0_i32_0 = arith.constant 0 : i32
    %c0_i32_1 = arith.constant 0 : i32
    return %c0_i32, %c0_i32_0 : i32, i32
  }
  func.func @transform_5(%arg0: i32) -> (i32, i32) {
    %c0_i32 = arith.constant 0 : i32
    %c0_i32_0 = arith.constant 0 : i32
    %c0_i32_1 = arith.constant 0 : i32
    return %c0_i32, %c0_i32_0 : i32, i32
  }
  func.func @transform_6(%arg0: i32) -> (i32, i32) {
    %c0_i32 = arith.constant 0 : i32
    %c0_i32_0 = arith.constant 0 : i32
    %c0_i32_1 = arith.constant 0 : i32
    return %c0_i32, %c0_i32_0 : i32, i32
  }
  func.func @transform_7(%arg0: i32) -> i32 {
    %c0_i32 = arith.constant 0 : i32
    %c0_i32_0 = arith.constant 0 : i32
    return %c0_i32 : i32
  }
  func.func @transform_8(%arg0: i32) -> i32 {
    %c0_i32 = arith.constant 0 : i32
    %c0_i32_0 = arith.constant 0 : i32
    return %c0_i32 : i32
  }
  func.func @transform_9(%arg0: i32) -> i32 {
    %c0_i32 = arith.constant 0 : i32
    %c0_i32_0 = arith.constant 0 : i32
    return %c0_i32 : i32
  }
  func.func @transform_10(%arg0: i32) -> (i32, i32, i32) {
    %c0_i32 = arith.constant 0 : i32
    %c0_i32_0 = arith.constant 0 : i32
    %c0_i32_1 = arith.constant 0 : i32
    return %arg0, %c0_i32, %c0_i32_0 : i32, i32, i32
  }
}

</mosaic_0001>

<llo_original>
// kernel: gcn_forward.1
$region0: #{gcn_forward.1}
  #allocation0 [shape = 'u32[]', space=smem, size = 0x4, offset = 0x4, fixed_abs, tag = 'smem constant byte address 0x4 - core index']
  #allocation1 [shape = 'u32[144,128]{1,0:T(1,128)}', space=vmem, size = 0x12000, scoped, tag = 'internal scratch']
  #allocation2 [shape = 'f32[1]{0:T(128)S(6)}', space=smem, size = 0x200, scoped, tag = 'scoped memory for gcn_forward.1']
  #allocation3 [shape = 'f32[1]{0:T(128)S(6)}', space=smem, size = 0x200, scoped, tag = 'scoped memory for gcn_forward.1']
  %s0 = inlined_call_operand.hbm [shape: f32[8,4,16,16], index: 0, kind: input, shape index: {}]
  %s1 = inlined_call_operand.hbm [shape: f32[8,16,16], index: 1, kind: input, shape index: {}]
  %s2 = inlined_call_operand.vmem [shape: f32[16,32], index: 2, kind: input, shape index: {}]
  %s3 = inlined_call_operand.vmem [shape: f32[1,32], index: 3, kind: input, shape index: {}]
  %s4 = inlined_call_operand.vmem [shape: f32[32,8], index: 4, kind: input, shape index: {}]
  %s5 = inlined_call_operand.vmem [shape: f32[1,8], index: 5, kind: input, shape index: {}]
  %s6 = inlined_call_operand.vmem [shape: f32[16,1], index: 6, kind: input, shape index: {}]
  %s7 = inlined_call_operand.vmem [shape: f32[4], index: 7, kind: input, shape index: {}]
  %s8 = inlined_call_operand.<no memory space> [shape: f32[1], index: 8, kind: input, shape index: {}]
  %s9 = inlined_call_operand.<no memory space> [shape: f32[1], index: 9, kind: input, shape index: {}]
  %s10 = inlined_call_operand.hbm [shape: f32[8,1,8], index: 10, kind: output, shape index: {}]
  %s11 = sld [smem:[#allocation0]]
  $region85: #{gcn_forward.1} parent=0
    _
  %s13 = ssub.s32 1, %s11
  %s14 = scalar_select 0, %s13, %s11
  %15 = sst [smem:[#allocation2]] %s8
  %16 = sst [smem:[#allocation3]] %s9
  $region1: #{gcn_forward.1} parent=0
    #allocation4 [shape = 'u8[65536]{0}', space=vmem, size = 0x10000, scoped, tag = 'input window, operand 0']
    #allocation5 [shape = 's32[2]{0}', space=sflag, size = 0x8, scoped, tag = 'scoped memory for gcn_forward.1']
    #allocation6 [shape = 's32[2]{0}', space=sflag, size = 0x8, scoped, tag = 'scoped memory for gcn_forward.1']
    #allocation7 [shape = 's32[2]{0}', space=sflag, size = 0x8, scoped, tag = 'scoped memory for gcn_forward.1']
    #allocation8 [shape = 'u8[16384]{0}', space=vmem, size = 0x4000, scoped, tag = 'input window, operand 1']
    #allocation9 [shape = 's32[2]{0}', space=sflag, size = 0x8, scoped, tag = 'scoped memory for gcn_forward.1']
    #allocation10 [shape = 'u8[512]{0}', space=smem, size = 0x200, scoped, tag = 'input window, operand 7, single buffered']
    #allocation11 [shape = 'u8[1024]{0}', space=vmem, size = 0x400, scoped, tag = 'output window, operand 0']
    %17 = vsyncpa [#allocation5], 0
    %s18 = scalar_lea.sflag [#allocation5], 1
    %19 = vsyncpa %s18, 0
    %20 = vsyncpa [#allocation9], 0
    %s21 = scalar_lea.sflag [#allocation9], 1
    %22 = vsyncpa %s21, 0
    %23 = vsyncpa [#allocation7], 0
    %24 = vsyncpa [#allocation6], 0
    %s25 = scalar_lea.sflag [#allocation6], 1
    %26 = vsyncpa %s25, 0
    loop: start=0, step=1, limit=10
    $region2: #{gcn_forward.1} parent=1 // loop_pre_header
      _
    $region3: #{gcn_forward.1} parent=1 // loop_header
      %s28 = sphi 0, %s32
      %p29 = scmp.ge.s32.totalorder %s28, 10
      %s38 = sphi 0, %s40
      %s41 = sphi 0, %s38
      %s42 = sphi 0, %s41
      %s58 = sphi 0, %s42
      %s64 = sphi 0, %s66
      %s67 = sphi 0, %s64
      %s68 = sphi 0, %s67
      %s84 = sphi 0, %s68
      %s88 = sphi 0, %s88
      %s90 = sphi 0, %s88
      %s91 = sphi 0, %s90
      %s105 = sphi 0, %s91
      %s109 = sphi 0, %s109
      %s111 = sphi 0, %s109
      %s112 = sphi 0, %s111
      %s126 = sphi 0, %s112
      %s130 = sphi 0, %s130
      %s132 = sphi 0, %s130
      %s133 = sphi 0, %s132
      %s147 = sphi 0, %s133
      %s151 = sphi 0, %s151
      %s153 = sphi 0, %s151
      %s154 = sphi 0, %s153
      %s168 = sphi 0, %s154
      %s172 = sphi 0, %s172
      %s174 = sphi 0, %s172
      %s175 = sphi 0, %s174
      %s189 = sphi 0, %s175
      %s193 = sphi 0, %s193
      %s195 = sphi 0, %s193
      %s196 = sphi 0, %s195
      %s210 = sphi 0, %s196
      %s214 = sphi 0, %s214
      %s216 = sphi 0, %s214
      %s217 = sphi 0, %s216
      %s231 = sphi 0, %s217
      %s235 = sphi 0, %s235
      %s237 = sphi 0, %s235
      %s238 = sphi 0, %s237
      %s252 = sphi 0, %s238
      %s258 = sphi 0, %s260
      %s261 = sphi 0, %s258
      %s262 = sphi 0, %s261
      %s278 = sphi 0, %s262
    $region4: #{gcn_forward.1} parent=1 // loop_header_branch
      %31 = sbr.rel (%p29) target = $region8
    $region5: #{gcn_forward.1} parent=1 // loop_body
      %s33 = ssub.s32 %s28, 1
      %s34 = ssub.s32 %s28, 2
      %s35 = sadd.s32 %s28, 1
      %s36 = ssub.s32 %s28, %s35
      %p37 = scmp.eq.s32.totalorder %s36, 0
      %s39 = sadd.s32 %s38, 1
      %s40 = scalar_select %p37, %s38, %s39
      %p43 = pneg %p37
      %p44 = scmp.eq.s32.totalorder %s28, 7
      %p45 = por %p43, %p44
      %p46 = scmp.ne.s32.totalorder %s38, %s41
      %p47 = scmp.eq.s32.totalorder %s28, 0
      %p48 = por %p46, %p47
      %p49 = scmp.ne.s32.totalorder %s38, %s41
      %p50 = scmp.eq.s32.totalorder %s33, 7
      %p51 = por %p49, %p50
      %p52 = scmp.ne.s32.totalorder %s41, %s42
      %p53 = scmp.eq.s32.totalorder %s33, 0
      %p54 = por %p52, %p53
      %p55 = scmp.ne.s32.totalorder %s41, %s42
      %p56 = scmp.eq.s32.totalorder %s34, 7
      %p57 = por %p55, %p56
      %p59 = scmp.ne.s32.totalorder %s42, %s58
      %p60 = scmp.eq.s32.totalorder %s34, 0
      %p61 = por %p59, %p60
      %s62 = ssub.s32 %s28, %s35
      %p63 = scmp.eq.s32.totalorder %s62, 0
      %s65 = sadd.s32 %s64, 1
      %s66 = scalar_select %p63, %s64, %s65
      %p69 = pneg %p63
      %p70 = scmp.eq.s32.totalorder %s28, 7
      %p71 = por %p69, %p70
      %p72 = scmp.ne.s32.totalorder %s64, %s67
      %p73 = scmp.eq.s32.totalorder %s28, 0
      %p74 = por %p72, %p73
      %p75 = scmp.ne.s32.totalorder %s64, %s67
      %p76 = scmp.eq.s32.totalorder %s33, 7
      %p77 = por %p75, %p76
      %p78 = scmp.ne.s32.totalorder %s67, %s68
      %p79 = scmp.eq.s32.totalorder %s33, 0
      %p80 = por %p78, %p79
      %p81 = scmp.ne.s32.totalorder %s67, %s68
      %p82 = scmp.eq.s32.totalorder %s34, 7
      %p83 = por %p81, %p82
      %p85 = scmp.ne.s32.totalorder %s68, %s84
      %p86 = scmp.eq.s32.totalorder %s34, 0
      %p87 = por %p85, %p86
      %s89 = sadd.s32 %s88, 1
      %p92 = scmp.eq.s32.totalorder %s28, 7
      %p93 = scmp.ne.s32.totalorder %s88, %s90
      %p94 = scmp.eq.s32.totalorder %s28, 0
      %p95 = por %p93, %p94
      %p96 = scmp.ne.s32.totalorder %s88, %s90
      %p97 = scmp.eq.s32.totalorder %s33, 7
      %p98 = por %p96, %p97
      %p99 = scmp.ne.s32.totalorder %s90, %s91
      %p100 = scmp.eq.s32.totalorder %s33, 0
      %p101 = por %p99, %p100
      %p102 = scmp.ne.s32.totalorder %s90, %s91
      %p103 = scmp.eq.s32.totalorder %s34, 7
      %p104 = por %p102, %p103
      %p106 = scmp.ne.s32.totalorder %s91, %s105
      %p107 = scmp.eq.s32.totalorder %s34, 0
      %p108 = por %p106, %p107
      %s110 = sadd.s32 %s109, 1
      %p113 = scmp.eq.s32.totalorder %s28, 7
      %p114 = scmp.ne.s32.totalorder %s109, %s111
      %p115 = scmp.eq.s32.totalorder %s28, 0
      %p116 = por %p114, %p115
      %p117 = scmp.ne.s32.totalorder %s109, %s111
      %p118 = scmp.eq.s32.totalorder %s33, 7
      %p119 = por %p117, %p118
      %p120 = scmp.ne.s32.totalorder %s111, %s112
      %p121 = scmp.eq.s32.totalorder %s33, 0
      %p122 = por %p120, %p121
      %p123 = scmp.ne.s32.totalorder %s111, %s112
      %p124 = scmp.eq.s32.totalorder %s34, 7
      %p125 = por %p123, %p124
      %p127 = scmp.ne.s32.totalorder %s112, %s126
      %p128 = scmp.eq.s32.totalorder %s34, 0
      %p129 = por %p127, %p128
      %s131 = sadd.s32 %s130, 1
      %p134 = scmp.eq.s32.totalorder %s28, 7
      %p135 = scmp.ne.s32.totalorder %s130, %s132
      %p136 = scmp.eq.s32.totalorder %s28, 0
      %p137 = por %p135, %p136
      %p138 = scmp.ne.s32.totalorder %s130, %s132
      %p139 = scmp.eq.s32.totalorder %s33, 7
      %p140 = por %p138, %p139
      %p141 = scmp.ne.s32.totalorder %s132, %s133
      %p142 = scmp.eq.s32.totalorder %s33, 0
      %p143 = por %p141, %p142
      %p144 = scmp.ne.s32.totalorder %s132, %s133
      %p145 = scmp.eq.s32.totalorder %s34, 7
      %p146 = por %p144, %p145
      %p148 = scmp.ne.s32.totalorder %s133, %s147
      %p149 = scmp.eq.s32.totalorder %s34, 0
      %p150 = por %p148, %p149
      %s152 = sadd.s32 %s151, 1
      %p155 = scmp.eq.s32.totalorder %s28, 7
      %p156 = scmp.ne.s32.totalorder %s151, %s153
      %p157 = scmp.eq.s32.totalorder %s28, 0
      %p158 = por %p156, %p157
      %p159 = scmp.ne.s32.totalorder %s151, %s153
      %p160 = scmp.eq.s32.totalorder %s33, 7
      %p161 = por %p159, %p160
      %p162 = scmp.ne.s32.totalorder %s153, %s154
      %p163 = scmp.eq.s32.totalorder %s33, 0
      %p164 = por %p162, %p163
      %p165 = scmp.ne.s32.totalorder %s153, %s154
      %p166 = scmp.eq.s32.totalorder %s34, 7
      %p167 = por %p165, %p166
      %p169 = scmp.ne.s32.totalorder %s154, %s168
      %p170 = scmp.eq.s32.totalorder %s34, 0
      %p171 = por %p169, %p170
      %s173 = sadd.s32 %s172, 1
      %p176 = scmp.eq.s32.totalorder %s28, 7
      %p177 = scmp.ne.s32.totalorder %s172, %s174
      %p178 = scmp.eq.s32.totalorder %s28, 0
      %p179 = por %p177, %p178
      %p180 = scmp.ne.s32.totalorder %s172, %s174
      %p181 = scmp.eq.s32.totalorder %s33, 7
      %p182 = por %p180, %p181
      %p183 = scmp.ne.s32.totalorder %s174, %s175
      %p184 = scmp.eq.s32.totalorder %s33, 0
      %p185 = por %p183, %p184
      %p186 = scmp.ne.s32.totalorder %s174, %s175
      %p187 = scmp.eq.s32.totalorder %s34, 7
      %p188 = por %p186, %p187
      %p190 = scmp.ne.s32.totalorder %s175, %s189
      %p191 = scmp.eq.s32.totalorder %s34, 0
      %p192 = por %p190, %p191
      %s194 = sadd.s32 %s193, 1
      %p197 = scmp.eq.s32.totalorder %s28, 7
      %p198 = scmp.ne.s32.totalorder %s193, %s195
      %p199 = scmp.eq.s32.totalorder %s28, 0
      %p200 = por %p198, %p199
      %p201 = scmp.ne.s32.totalorder %s193, %s195
      %p202 = scmp.eq.s32.totalorder %s33, 7
      %p203 = por %p201, %p202
      %p204 = scmp.ne.s32.totalorder %s195, %s196
      %p205 = scmp.eq.s32.totalorder %s33, 0
      %p206 = por %p204, %p205
      %p207 = scmp.ne.s32.totalorder %s195, %s196
      %p208 = scmp.eq.s32.totalorder %s34, 7
      %p209 = por %p207, %p208
      %p211 = scmp.ne.s32.totalorder %s196, %s210
      %p212 = scmp.eq.s32.totalorder %s34, 0
      %p213 = por %p211, %p212
      %s215 = sadd.s32 %s214, 1
      %p218 = scmp.eq.s32.totalorder %s28, 7
      %p219 = scmp.ne.s32.totalorder %s214, %s216
      %p220 = scmp.eq.s32.totalorder %s28, 0
      %p221 = por %p219, %p220
      %p222 = scmp.ne.s32.totalorder %s214, %s216
      %p223 = scmp.eq.s32.totalorder %s33, 7
      %p224 = por %p222, %p223
      %p225 = scmp.ne.s32.totalorder %s216, %s217
      %p226 = scmp.eq.s32.totalorder %s33, 0
      %p227 = por %p225, %p226
      %p228 = scmp.ne.s32.totalorder %s216, %s217
      %p229 = scmp.eq.s32.totalorder %s34, 7
      %p230 = por %p228, %p229
      %p232 = scmp.ne.s32.totalorder %s217, %s231
      %p233 = scmp.eq.s32.totalorder %s34, 0
      %p234 = por %p232, %p233
      %s236 = sadd.s32 %s235, 1
      %p239 = scmp.eq.s32.totalorder %s28, 7
      %p240 = scmp.ne.s32.totalorder %s235, %s237
      %p241 = scmp.eq.s32.totalorder %s28, 0
      %p242 = por %p240, %p241
      %p243 = scmp.ne.s32.totalorder %s235, %s237
      %p244 = scmp.eq.s32.totalorder %s33, 7
      %p245 = por %p243, %p244
      %p246 = scmp.ne.s32.totalorder %s237, %s238
      %p247 = scmp.eq.s32.totalorder %s33, 0
      %p248 = por %p246, %p247
      %p249 = scmp.ne.s32.totalorder %s237, %s238
      %p250 = scmp.eq.s32.totalorder %s34, 7
      %p251 = por %p249, %p250
      %p253 = scmp.ne.s32.totalorder %s238, %s252
      %p254 = scmp.eq.s32.totalorder %s34, 0
      %p255 = por %p253, %p254
      %s256 = ssub.s32 %s28, %s35
      %p257 = scmp.eq.s32.totalorder %s256, 0
      %s259 = sadd.s32 %s258, 1
      %s260 = scalar_select %p257, %s258, %s259
      %p263 = pneg %p257
      %p264 = scmp.eq.s32.totalorder %s28, 7
      %p265 = por %p263, %p264
      %p266 = scmp.ne.s32.totalorder %s258, %s261
      %p267 = scmp.eq.s32.totalorder %s28, 0
      %p268 = por %p266, %p267
      %p269 = scmp.ne.s32.totalorder %s258, %s261
      %p270 = scmp.eq.s32.totalorder %s33, 7
      %p271 = por %p269, %p270
      %p272 = scmp.ne.s32.totalorder %s261, %s262
      %p273 = scmp.eq.s32.totalorder %s33, 0
      %p274 = por %p272, %p273
      %p275 = scmp.ne.s32.totalorder %s261, %s262
      %p276 = scmp.eq.s32.totalorder %s34, 7
      %p277 = por %p275, %p276
      %p279 = scmp.ne.s32.totalorder %s262, %s278
      %p280 = scmp.eq.s32.totalorder %s34, 0
      %p281 = por %p279, %p280
      %p282 = scmp.le.s32.totalorder 1, %s28
      %p283 = scmp.lt.s32.totalorder %s28, 9
      %p284 = pnand %p282, %p283
      %p285 = pneg %p284
      // Predicated region
      $region9: #{gcn_forward.1} parent=5 // pred_check
        _
      $region10: #{gcn_forward.1} parent=5 // pred_check_branch
        %287 = sbr.rel (%p284) target = $region12
      $region11: #{gcn_forward.1} parent=5 // pred_region
        %s288 = ssub.s32 %s28, 1
        // Predicated region
        $region13: #{gcn_forward.1} parent=11 // pred_check
          %p289 = pneg %p101
        $region14: #{gcn_forward.1} parent=11 // pred_check_branch
          %291 = sbr.rel (%p289) target = $region16
        $region15: #{gcn_forward.1} parent=11 // pred_region
          _
        $region16: #{gcn_forward.1} parent=11 // pred_fallthru
          _
        // Predicated region
        $region17: #{gcn_forward.1} parent=11 // pred_check
          %p292 = pneg %p122
        $region18: #{gcn_forward.1} parent=11 // pred_check_branch
          %294 = sbr.rel (%p292) target = $region20
        $region19: #{gcn_forward.1} parent=11 // pred_region
          _
        $region20: #{gcn_forward.1} parent=11 // pred_fallthru
          _
        // Predicated region
        $region21: #{gcn_forward.1} parent=11 // pred_check
          %p295 = pneg %p143
        $region22: #{gcn_forward.1} parent=11 // pred_check_branch
          %297 = sbr.rel (%p295) target = $region24
        $region23: #{gcn_forward.1} parent=11 // pred_region
          _
        $region24: #{gcn_forward.1} parent=11 // pred_fallthru
          _
        // Predicated region
        $region25: #{gcn_forward.1} parent=11 // pred_check
          %p298 = pneg %p164
        $region26: #{gcn_forward.1} parent=11 // pred_check_branch
          %300 = sbr.rel (%p298) target = $region28
        $region27: #{gcn_forward.1} parent=11 // pred_region
          _
        $region28: #{gcn_forward.1} parent=11 // pred_fallthru
          _
        // Predicated region
        $region29: #{gcn_forward.1} parent=11 // pred_check
          %p301 = pneg %p185
        $region30: #{gcn_forward.1} parent=11 // pred_check_branch
          %303 = sbr.rel (%p301) target = $region32
        $region31: #{gcn_forward.1} parent=11 // pred_region
          _
        $region32: #{gcn_forward.1} parent=11 // pred_fallthru
          _
        // Predicated region
        $region33: #{gcn_forward.1} parent=11 // pred_check
          %p304 = pneg %p206
        $region34: #{gcn_forward.1} parent=11 // pred_check_branch
          %306 = sbr.rel (%p304) target = $region36
        $region35: #{gcn_forward.1} parent=11 // pred_region
          %s308 = ssub.s32 16, 16
          %309 = vsyncadd [#allocation7], %s308
          %s311 = sshll.u32 %s7, 4
          %s312 = int_to_ptr.vmem [resolvable:$true] %s311
          %314 = dma.vmem_to_smem %s312, 16, [#allocation10], [#allocation7]
        $region36: #{gcn_forward.1} parent=11 // pred_fallthru
          _
        // Predicated region
        $region37: #{gcn_forward.1} parent=11 // pred_check
          %p315 = pneg %p227
        $region38: #{gcn_forward.1} parent=11 // pred_check_branch
          %317 = sbr.rel (%p315) target = $region40
        $region39: #{gcn_forward.1} parent=11 // pred_region
          _
        $region40: #{gcn_forward.1} parent=11 // pred_fallthru
          _
        // Predicated region
        $region41: #{gcn_forward.1} parent=11 // pred_check
          %p318 = pneg %p248
        $region42: #{gcn_forward.1} parent=11 // pred_check_branch
          %320 = sbr.rel (%p318) target = $region44
        $region43: #{gcn_forward.1} parent=11 // pred_region
          _
        $region44: #{gcn_forward.1} parent=11 // pred_fallthru
          _
      $region12: #{gcn_forward.1} parent=5 // pred_fallthru
        _
      %p321 = scmp.lt.s32.totalorder %s28, 8
      // Predicated region
      $region45: #{gcn_forward.1} parent=5 // pred_check
        %p322 = pneg %p321
      $region46: #{gcn_forward.1} parent=5 // pred_check_branch
        %324 = sbr.rel (%p322) target = $region48
      $region47: #{gcn_forward.1} parent=5 // pred_region
        // Predicated region
        $region49: #{gcn_forward.1} parent=47 // pred_check
          %p325 = pneg %p48
        $region50: #{gcn_forward.1} parent=47 // pred_check_branch
          %327 = sbr.rel (%p325) target = $region52
        $region51: #{gcn_forward.1} parent=47 // pred_region
          %s328 = sand.u32 %s38, 1
          %s329 = scalar_lea.sflag [#allocation5], %s328
          %s330 = sand.u32 %s38, 1
          %s331 = smul.addr %s330, 64
          %s332 = scalar_lea.vmem [#allocation4], %s331
          %s334 = ssub.s32 1024, 1024
          %335 = vsyncadd %s329, %s334
          %s336 = smul.addr %s28, 8
          %s337 = smul.addr %s336, 128
          %s338 = scalar_lea.hbm %s0, %s337
          %s339 = sshll.u32 %s332, 4
          %s340 = int_to_ptr.vmem [resolvable:$true] %s339
          %345 = dma.hbm_to_vmem [thread:$0]  %s338, 1024, %s340, %s329, 128, 128, 8
        $region52: #{gcn_forward.1} parent=47 // pred_fallthru
          _
        // Predicated region
        $region53: #{gcn_forward.1} parent=47 // pred_check
          %p346 = pneg %p74
        $region54: #{gcn_forward.1} parent=47 // pred_check_branch
          %348 = sbr.rel (%p346) target = $region56
        $region55: #{gcn_forward.1} parent=47 // pred_region
          %s349 = sand.u32 %s64, 1
          %s350 = scalar_lea.sflag [#allocation9], %s349
          %s351 = sand.u32 %s64, 1
          %s352 = smul.addr %s351, 16
          %s353 = scalar_lea.vmem [#allocation8], %s352
          %s355 = ssub.s32 256, 256
          %356 = vsyncadd %s350, %s355
          %s357 = smul.addr %s28, 2
          %s358 = smul.addr %s357, 128
          %s359 = scalar_lea.hbm %s1, %s358
          %s360 = sshll.u32 %s353, 4
          %s361 = int_to_ptr.vmem [resolvable:$true] %s360
          %366 = dma.hbm_to_vmem [thread:$0]  %s359, 256, %s361, %s350, 128, 128, 8
        $region56: #{gcn_forward.1} parent=47 // pred_fallthru
          _
      $region48: #{gcn_forward.1} parent=5 // pred_fallthru
        _
      %p367 = scmp.le.s32.totalorder 1, %s28
      %p368 = scmp.lt.s32.totalorder %s28, 9
      %p369 = pnand %p367, %p368
      %p370 = pneg %p369
      // Predicated region
      $region57: #{gcn_forward.1} parent=5 // pred_check
        _
      $region58: #{gcn_forward.1} parent=5 // pred_check_branch
        %372 = sbr.rel (%p369) target = $region60
      $region59: #{gcn_forward.1} parent=5 // pred_region
        %s373 = ssub.s32 %s28, 1
        %s374 = sand.u32 %s41, 1
        %s375 = scalar_lea.sflag [#allocation5], %s374
        %s376 = sand.u32 %s41, 1
        %s377 = smul.addr %s376, 64
        %s378 = scalar_lea.vmem [#allocation4], %s377
        // Predicated region
        $region61: #{gcn_forward.1} parent=59 // pred_check
          %p379 = pneg %p54
        $region62: #{gcn_forward.1} parent=59 // pred_check_branch
          %381 = sbr.rel (%p379) target = $region64
        $region63: #{gcn_forward.1} parent=59 // pred_region
          %382 = dma.done %s375, 1024
        $region64: #{gcn_forward.1} parent=59 // pred_fallthru
          _
        %s383 = sand.u32 %s67, 1
        %s384 = scalar_lea.sflag [#allocation9], %s383
        %s385 = sand.u32 %s67, 1
        %s386 = smul.addr %s385, 16
        %s387 = scalar_lea.vmem [#allocation8], %s386
        // Predicated region
        $region65: #{gcn_forward.1} parent=59 // pred_check
          %p388 = pneg %p80
        $region66: #{gcn_forward.1} parent=59 // pred_check_branch
          %390 = sbr.rel (%p388) target = $region68
        $region67: #{gcn_forward.1} parent=59 // pred_region
          %391 = dma.done %s384, 256
        $region68: #{gcn_forward.1} parent=59 // pred_fallthru
          _
        // Predicated region
        $region69: #{gcn_forward.1} parent=59 // pred_check
          %p392 = pneg %p206
        $region70: #{gcn_forward.1} parent=59 // pred_check_branch
          %394 = sbr.rel (%p392) target = $region72
        $region71: #{gcn_forward.1} parent=59 // pred_region
          %395 = dma.done [#allocation7], 16
        $region72: #{gcn_forward.1} parent=59 // pred_fallthru
          _
        %396 = sfence
        %s397 = sand.u32 %s41, 1
        %s398 = scalar_lea.sflag [#allocation5], %s397
        %s399 = sand.u32 %s41, 1
        %s400 = smul.addr %s399, 64
        %s401 = scalar_lea.vmem [#allocation4], %s400
        %p402 = pneg %p54
        %p403 = pneg %p51
        %s404 = sand.u32 %s67, 1
        %s405 = scalar_lea.sflag [#allocation9], %s404
        %s406 = sand.u32 %s67, 1
        %s407 = smul.addr %s406, 16
        %s408 = scalar_lea.vmem [#allocation8], %s407
        %p409 = pneg %p80
        %p410 = pneg %p77
        %p411 = pneg %p101
        %p412 = pneg %p98
        %p413 = pneg %p122
        %p414 = pneg %p119
        %p415 = pneg %p143
        %p416 = pneg %p140
        %p417 = pneg %p164
        %p418 = pneg %p161
        %p419 = pneg %p185
        %p420 = pneg %p182
        %p421 = pneg %p206
        %p422 = pneg %p203
        %p423 = pneg %p227
        %p424 = pneg %p224
        %p425 = pneg %p248
        %p426 = pneg %p245
        %p427 = pneg %p274
        %p428 = pneg %p271
        %s429 = sand.u32 %s261, 1
        %s430 = scalar_lea.sflag [#allocation6], %s429
        %s431 = sand.u32 %s261, 1
        %s432 = scalar_lea.vmem [#allocation11], %s431
        %v434 = vld [vmem:[%s378] sm:$0xff]
        %v435 = vld [vmem:[%s378 + $0x8] sm:$0xff]
        %s436 = sld [smem:[#allocation10]]
        %v437 = vstv %s436
        %v438 = vmul.f32 %v434, %v437
        %v439 = vmul.f32 %v435, %v437
        %s440 = scalar_lea.vmem %s378, 16 [#allocation4]
        %v441 = vld [vmem:[%s440] sm:$0xff]
        %v442 = vld [vmem:[%s440 + $0x8] sm:$0xff]
        %s443 = sld [smem:[#allocation10 + $0x1]]
        %v444 = vstv %s443
        %v445 = vmul.f32 %v441, %v444
        %v446 = vmul.f32 %v442, %v444
        %v447 = vadd.f32 %v438, %v445
        %v448 = vadd.f32 %v439, %v446
        %s449 = scalar_lea.vmem %s378, 32 [#allocation4]
        %v450 = vld [vmem:[%s449] sm:$0xff]
        %v451 = vld [vmem:[%s449 + $0x8] sm:$0xff]
        %s452 = sld [smem:[#allocation10 + $0x2]]
        %v453 = vstv %s452
        %v454 = vmul.f32 %v450, %v453
        %v455 = vmul.f32 %v451, %v453
        %v456 = vadd.f32 %v447, %v454
        %v457 = vadd.f32 %v448, %v455
        %s458 = scalar_lea.vmem %s378, 48 [#allocation4]
        %v459 = vld [vmem:[%s458] sm:$0xff]
        %v460 = vld [vmem:[%s458 + $0x8] sm:$0xff]
        %s461 = sld [smem:[#allocation10 + $0x3]]
        %v462 = vstv %s461
        %v463 = vmul.f32 %v459, %v462
        %v464 = vmul.f32 %v460, %v462
        %v465 = vadd.f32 %v456, %v463
        %v466 = vadd.f32 %v457, %v464
        %s467 = sld [smem:[#allocation2]]
        %v468 = vstv %s467
        %v469 = vadd.f32 %v465, %v468
        %v470 = vadd.f32 %v466, %v468
        %vm471 = vcmask 130048
        %v472 = vsel %vm471, %v469, 0.0
        %473 = vadd.xlane.f32.xlu0 %v472
        %v474 = vpop.xlane.xlu0 %473
        %v475 = vsel %vm471, %v470, 0.0
        %476 = vadd.xlane.f32.xlu0 %v475
        %v477 = vpop.xlane.xlu0 %476
        %vm478 = vcmask 7168
        %v479 = vsel %vm478, %v474, 0.0
        %v480 = vsel %vm478, %v477, 0.0
        %v481 = vadd.f32 %v479, %v480
        %482 = vadd.xlane.f32.xlu0 %v481
        %v483 = vpop.xlane.xlu0 %482
        %v484 = vrot.slane %v483, 4
        %v485 = vadd.f32 %v483, %v484
        %v486 = vrot.slane %v485, 2
        %v487 = vadd.f32 %v485, %v486
        %v488 = vrot.slane %v487, 1
        %v489 = vadd.f32 %v487, %v488
        %s490 = vtos %v489
        %s491 = smul.f32 %s490, 0.00390625
        %v492 = vstv %s491
        %vm493 = vcmp.gt.f32.partialorder %v469, %v492
        %vm494 = vcmp.gt.f32.partialorder %v470, %v492
        %v495 = vsel %vm493, 1.0, 0.0
        %v496 = vsel %vm494, 1.0, 0.0
        %v497 = vpack.c.bf16 %v496, %v495
        %v498 = vld [vmem:[%s387] sm:$0xff]
        %v499 = vld [vmem:[%s387 + $0x8] sm:$0xff]
        %v500 = vpack.c.bf16 %v499, %v498
        %v501 = vld [vmem:[%s2] sm:$0xff]
        %v502 = vld [vmem:[%s2 + $0x8] sm:$0xff]
        %v503 = vpack.c.bf16 %v502, %v501
        %v505 = vsel %vm471, %v500, 0
        %507 = vmatprep.subr.bf16.mxu0 0
        %508 = vmatpush1.bf16.msra.mxu0 %v503
        %509 = vmatprep.subr.bf16.mxu0 0
        %510 = vmatpush1.bf16.msra.mxu0 0
        %511 = vmatprep.subr.bf16.mxu0 0
        %512 = vmatpush1.bf16.msra.mxu0 0
        %513 = vmatprep.subr.bf16.mxu0 0
        %514 = vmatpush1.bf16.msra.mxu0 0
        %515 = vmatprep.subr.bf16.mxu0 0
        %516 = vmatpush1.bf16.msra.mxu0 0
        %517 = vmatprep.subr.bf16.mxu0 0
        %518 = vmatpush1.bf16.msra.mxu0 0
        %519 = vmatprep.subr.bf16.mxu0 0
        %520 = vmatpush1.bf16.msra.mxu0 0
        %521 = vmatprep.subr.bf16.mxu0 0
        %522 = vmatpush1.bf16.msra.mxu0 0
        %523 = vmatprep.subr.bf16.mxu0 0
        %524 = vmatpush1.bf16.msra.mxu0 0
        %525 = vmatprep.subr.bf16.mxu0 0
        %526 = vmatpush1.bf16.msra.mxu0 0
        %527 = vmatprep.subr.bf16.mxu0 0
        %528 = vmatpush1.bf16.msra.mxu0 0
        %529 = vmatprep.subr.bf16.mxu0 0
        %530 = vmatpush1.bf16.msra.mxu0 0
        %531 = vmatprep.subr.bf16.mxu0 0
        %532 = vmatpush1.bf16.msra.mxu0 0
        %533 = vmatprep.subr.bf16.mxu0 0
        %534 = vmatpush1.bf16.msra.mxu0 0
        %535 = vmatprep.subr.bf16.mxu0 0
        %536 = vmatpush1.bf16.msra.mxu0 0
        %537 = vmatprep.subr.bf16.mxu0 0
        %538 = vmatpush1.bf16.msra.mxu0 0
        %539 = vmatprep.mubr.bf16.mxu0 0
        %540 = vmatmul.mubr.bf16.gmra.mrb[0].mxu0 %v505
        %v541 = vpop.f32.mrb[0].mxu0
        %v542 = vadd.f32 0.0, %v541
        %v543 = vpop.f32.mrb[0].mxu0
        %v544 = vpop.f32.mrb[0].mxu0
        %v545 = vadd.f32 0.0, %v544
        %v546 = vpop.f32.mrb[0].mxu0
        %547 = vdwg.mxu0
        %v548 = vpack.c.bf16 %v545, %v542
        %v549 = vld [vmem:[%s3] sm:$0x1]
        %v551 = vlaneseq
        %v552 = vshrl.u32 %v551, 7
        %v553 = vsub.s32 0, %v552
        %v554 = vrot.slane %v549, %v553
        %v557 = vsel %vm471, %v497, 0
        %559 = vmatprep.subr.bf16.mxu0 0
        %560 = vmatpush1.bf16.msra.mxu0 %v548
        %561 = vmatprep.subr.bf16.mxu0 0
        %562 = vmatpush1.bf16.msra.mxu0 0
        %563 = vmatprep.subr.bf16.mxu0 0
        %564 = vmatpush1.bf16.msra.mxu0 0
        %565 = vmatprep.subr.bf16.mxu0 0
        %566 = vmatpush1.bf16.msra.mxu0 0
        %567 = vmatprep.subr.bf16.mxu0 0
        %568 = vmatpush1.bf16.msra.mxu0 0
        %569 = vmatprep.subr.bf16.mxu0 0
        %570 = vmatpush1.bf16.msra.mxu0 0
        %571 = vmatprep.subr.bf16.mxu0 0
        %572 = vmatpush1.bf16.msra.mxu0 0
        %573 = vmatprep.subr.bf16.mxu0 0
        %574 = vmatpush1.bf16.msra.mxu0 0
        %575 = vmatprep.subr.bf16.mxu0 0
        %576 = vmatpush1.bf16.msra.mxu0 0
        %577 = vmatprep.subr.bf16.mxu0 0
        %578 = vmatpush1.bf16.msra.mxu0 0
        %579 = vmatprep.subr.bf16.mxu0 0
        %580 = vmatpush1.bf16.msra.mxu0 0
        %581 = vmatprep.subr.bf16.mxu0 0
        %582 = vmatpush1.bf16.msra.mxu0 0
        %583 = vmatprep.subr.bf16.mxu0 0
        %584 = vmatpush1.bf16.msra.mxu0 0
        %585 = vmatprep.subr.bf16.mxu0 0
        %586 = vmatpush1.bf16.msra.mxu0 0
        %587 = vmatprep.subr.bf16.mxu0 0
        %588 = vmatpush1.bf16.msra.mxu0 0
        %589 = vmatprep.subr.bf16.mxu0 0
        %590 = vmatpush1.bf16.msra.mxu0 0
        %591 = vmatprep.mubr.bf16.mxu0 0
        %592 = vmatmul.mubr.bf16.gmra.mrb[0].mxu0 %v557
        %v593 = vpop.f32.mrb[0].mxu0
        %v594 = vadd.f32 %v554, %v593
        %v595 = vpop.f32.mrb[0].mxu0
        %v596 = vpop.f32.mrb[0].mxu0
        %v597 = vadd.f32 %v554, %v596
        %v598 = vpop.f32.mrb[0].mxu0
        %599 = vdwg.mxu0
        %v600 = vmax.f32 %v594, 0.0
        %v601 = vmax.f32 %v597, 0.0
        %v602 = vpack.c.bf16 %v601, %v600
        %v603 = vld [vmem:[%s4] sm:$0xff]
        %v604 = vld [vmem:[%s4 + $0x8] sm:$0xff]
        %v605 = vld [vmem:[%s4 + $0x10] sm:$0xff]
        %v606 = vld [vmem:[%s4 + $0x18] sm:$0xff]
        %v607 = vpack.c.bf16 %v604, %v603
        %v608 = vpack.c.bf16 %v606, %v605
        %vm609 = vcmask 261120
        %v611 = vsel %vm609, %v602, 0
        %613 = vmatprep.subr.bf16.mxu0 0
        %614 = vmatpush1.bf16.msra.mxu0 %v607
        %615 = vmatprep.subr.bf16.mxu0 0
        %616 = vmatpush1.bf16.msra.mxu0 %v608
        %617 = vmatprep.subr.bf16.mxu0 0
        %618 = vmatpush1.bf16.msra.mxu0 0
        %619 = vmatprep.subr.bf16.mxu0 0
        %620 = vmatpush1.bf16.msra.mxu0 0
        %621 = vmatprep.subr.bf16.mxu0 0
        %622 = vmatpush1.bf16.msra.mxu0 0
        %623 = vmatprep.subr.bf16.mxu0 0
        %624 = vmatpush1.bf16.msra.mxu0 0
        %625 = vmatprep.subr.bf16.mxu0 0
        %626 = vmatpush1.bf16.msra.mxu0 0
        %627 = vmatprep.subr.bf16.mxu0 0
        %628 = vmatpush1.bf16.msra.mxu0 0
        %629 = vmatprep.subr.bf16.mxu0 0
        %630 = vmatpush1.bf16.msra.mxu0 0
        %631 = vmatprep.subr.bf16.mxu0 0
        %632 = vmatpush1.bf16.msra.mxu0 0
        %633 = vmatprep.subr.bf16.mxu0 0
        %634 = vmatpush1.bf16.msra.mxu0 0
        %635 = vmatprep.subr.bf16.mxu0 0
        %636 = vmatpush1.bf16.msra.mxu0 0
        %637 = vmatprep.subr.bf16.mxu0 0
        %638 = vmatpush1.bf16.msra.mxu0 0
        %639 = vmatprep.subr.bf16.mxu0 0
        %640 = vmatpush1.bf16.msra.mxu0 0
        %641 = vmatprep.subr.bf16.mxu0 0
        %642 = vmatpush1.bf16.msra.mxu0 0
        %643 = vmatprep.subr.bf16.mxu0 0
        %644 = vmatpush1.bf16.msra.mxu0 0
        %645 = vmatprep.mubr.bf16.mxu0 0
        %646 = vmatmul.mubr.bf16.gmra.mrb[0].mxu0 %v611
        %v647 = vpop.f32.mrb[0].mxu0
        %v648 = vadd.f32 0.0, %v647
        %v649 = vpop.f32.mrb[0].mxu0
        %v650 = vpop.f32.mrb[0].mxu0
        %v651 = vadd.f32 0.0, %v650
        %v652 = vpop.f32.mrb[0].mxu0
        %653 = vdwg.mxu0
        %v654 = vpack.c.bf16 %v651, %v648
        %v655 = vld [vmem:[%s5] sm:$0x1]
        %v657 = vlaneseq
        %v658 = vshrl.u32 %v657, 7
        %v659 = vsub.s32 0, %v658
        %v660 = vrot.slane %v655, %v659
        %662 = vmatprep.subr.bf16.mxu0 0
        %663 = vmatpush1.bf16.msra.mxu0 %v654
        %664 = vmatprep.subr.bf16.mxu0 0
        %665 = vmatpush1.bf16.msra.mxu0 0
        %666 = vmatprep.subr.bf16.mxu0 0
        %667 = vmatpush1.bf16.msra.mxu0 0
        %668 = vmatprep.subr.bf16.mxu0 0
        %669 = vmatpush1.bf16.msra.mxu0 0
        %670 = vmatprep.subr.bf16.mxu0 0
        %671 = vmatpush1.bf16.msra.mxu0 0
        %672 = vmatprep.subr.bf16.mxu0 0
        %673 = vmatpush1.bf16.msra.mxu0 0
        %674 = vmatprep.subr.bf16.mxu0 0
        %675 = vmatpush1.bf16.msra.mxu0 0
        %676 = vmatprep.subr.bf16.mxu0 0
        %677 = vmatpush1.bf16.msra.mxu0 0
        %678 = vmatprep.subr.bf16.mxu0 0
        %679 = vmatpush1.bf16.msra.mxu0 0
        %680 = vmatprep.subr.bf16.mxu0 0
        %681 = vmatpush1.bf16.msra.mxu0 0
        %682 = vmatprep.subr.bf16.mxu0 0
        %683 = vmatpush1.bf16.msra.mxu0 0
        %684 = vmatprep.subr.bf16.mxu0 0
        %685 = vmatpush1.bf16.msra.mxu0 0
        %686 = vmatprep.subr.bf16.mxu0 0
        %687 = vmatpush1.bf16.msra.mxu0 0
        %688 = vmatprep.subr.bf16.mxu0 0
        %689 = vmatpush1.bf16.msra.mxu0 0
        %690 = vmatprep.subr.bf16.mxu0 0
        %691 = vmatpush1.bf16.msra.mxu0 0
        %692 = vmatprep.subr.bf16.mxu0 0
        %693 = vmatpush1.bf16.msra.mxu0 0
        %694 = vmatprep.mubr.bf16.mxu0 0
        %695 = vmatmul.mubr.bf16.gmra.mrb[0].mxu0 %v557
        %v696 = vpop.f32.mrb[0].mxu0
        %v697 = vadd.f32 %v660, %v696
        %v698 = vpop.f32.mrb[0].mxu0
        %v699 = vpop.f32.mrb[0].mxu0
        %v700 = vadd.f32 %v660, %v699
        %v701 = vpop.f32.mrb[0].mxu0
        %702 = vdwg.mxu0
        %vm703 = vcmask 64512
        %v704 = vsel %vm703, %v697, -inf
        %705 = vmax.xlane.f32.xlu0 %v704
        %v706 = vpop.xlane.xlu0 %705
        %v707 = vsel %vm703, %v700, -inf
        %708 = vmax.xlane.f32.xlu0 %v707
        %v709 = vpop.xlane.xlu0 %708
        %v710 = vsub.f32 %v697, %v706
        %v711 = vsub.f32 %v700, %v709
        %v712 = vmul.f32 %v710, 1.442695
        %v713 = vpow.pop %v712
        %v714 = vmul.f32 %v711, 1.442695
        %v715 = vpow.pop %v714
        %v716 = vsel %vm703, %v713, 0.0
        %717 = vadd.xlane.f32.xlu0 %v716
        %v718 = vpop.xlane.xlu0 %717
        %v719 = vsel %vm703, %v715, 0.0
        %720 = vadd.xlane.f32.xlu0 %v719
        %v721 = vpop.xlane.xlu0 %720
        %v722 = vlog2.pop %v718
        %v723 = vmul.f32 %v722, 0.6931472
        %v724 = vlog2.pop %v721
        %v725 = vmul.f32 %v724, 0.6931472
        %v726 = vsub.f32 %v710, %v723
        %v727 = vsub.f32 %v711, %v725
        %v728 = vld [vmem:[%s6] sm:$0xff]
        %v729 = vld [vmem:[%s6 + $0x8] sm:$0xff]
        %731 = vset.pattern.permute.xlu0 0
        %732 = vperm.xlu0 %731, %v728
        %v733 = vpop.permute.xlu0 %732
        %736 = vset.pattern.permute.xlu0 0
        %737 = vperm.xlu0 %736, %v729
        %v738 = vpop.permute.xlu0 %737
        %v740 = vmul.f32 %v733, %v726
        %v741 = vmul.f32 %v738, %v727
        %v742 = vsel %vm703, %v740, 0.0
        %v743 = vsel %vm703, %v741, 0.0
        %v744 = vadd.f32 %v742, %v743
        %v745 = vrot.slane %v744, 4
        %v746 = vadd.f32 %v744, %v745
        %v747 = vrot.slane %v746, 2
        %v748 = vadd.f32 %v746, %v747
        %v749 = vrot.slane %v748, 1
        %v750 = vadd.f32 %v748, %v749
        %s751 = sld [smem:[#allocation3]]
        %v752 = vstv %s751
        %v753 = vadd.f32 %v750, %v752
        %vm754 = vcmask 57344
        %755 = vst.msk [vmem:[%s432] sm:$0x1] %vm754, %v753
        %s756 = sand.u32 %s261, 1
        %s757 = scalar_lea.sflag [#allocation6], %s756
        %s758 = sand.u32 %s261, 1
        %s759 = scalar_lea.vmem [#allocation11], %s758
        // Predicated region
        $region73: #{gcn_forward.1} parent=59 // pred_check
          %p760 = pneg %p271
        $region74: #{gcn_forward.1} parent=59 // pred_check_branch
          %762 = sbr.rel (%p760) target = $region76
        $region75: #{gcn_forward.1} parent=59 // pred_region
          %s764 = ssub.s32 16, 16
          %765 = vsyncadd %s757, %s764
          %s766 = smul.addr %s33, 16
          %s767 = scalar_lea.hbm %s10, %s766
          %s769 = sshll.u32 %s759, 4
          %s770 = int_to_ptr.vmem [resolvable:$true] %s769
          %772 = dma.vmem_to_hbm [thread:$0]  %s770, 16, %s767, %s757
        $region76: #{gcn_forward.1} parent=59 // pred_fallthru
          _
      $region60: #{gcn_forward.1} parent=5 // pred_fallthru
        _
      %p773 = scmp.le.s32.totalorder 2, %s28
      // Predicated region
      $region77: #{gcn_forward.1} parent=5 // pred_check
        %p774 = pneg %p773
      $region78: #{gcn_forward.1} parent=5 // pred_check_branch
        %776 = sbr.rel (%p774) target = $region80
      $region79: #{gcn_forward.1} parent=5 // pred_region
        %s777 = ssub.s32 %s28, 2
        // Predicated region
        $region81: #{gcn_forward.1} parent=79 // pred_check
          %p778 = pneg %p277
        $region82: #{gcn_forward.1} parent=79 // pred_check_branch
          %780 = sbr.rel (%p778) target = $region84
        $region83: #{gcn_forward.1} parent=79 // pred_region
          %s781 = sand.u32 %s262, 1
          %s782 = scalar_lea.sflag [#allocation6], %s781
          %s783 = sand.u32 %s262, 1
          %s784 = scalar_lea.vmem [#allocation11], %s783
          %785 = dma.done %s782, 16
        $region84: #{gcn_forward.1} parent=79 // pred_fallthru
          _
      $region80: #{gcn_forward.1} parent=5 // pred_fallthru
        _
    $region6: #{gcn_forward.1} parent=1 // loop_footer
      %s32 = sadd.s32 1, %s28
    $region7: #{gcn_forward.1} parent=1 // loop_footer_branch
      %27 = sbr.rel target = $region3
    $region8: #{gcn_forward.1} parent=1 // loop_exit
      _
    %786 = vsyncpa [#allocation5], 1
    %s787 = scalar_lea.sflag [#allocation5], 1
    %788 = vsyncpa %s787, 1
    %789 = vsyncpa [#allocation9], 1
    %s790 = scalar_lea.sflag [#allocation9], 1
    %791 = vsyncpa %s790, 1
    %792 = vsyncpa [#allocation6], 1
    %s793 = scalar_lea.sflag [#allocation6], 1
    %794 = vsyncpa %s793, 1
    %795 = vsyncpa [#allocation7], 1
    %s796 = scalar_lea.sflag [#allocation7], 1
    %797 = vsyncpa %s796, 1

</llo_original>
